<compile_context>
chip_gen: v5e
topology: v5e:2x2
jax: 0.10.0
libtpu: 0.0.40
codegen_flags: <defaults>
</compile_context>

<pallas_src>
import functools

import jax
import jax.numpy as jnp
from jax.experimental import pallas as pl
from jax.experimental.pallas import tpu as pltpu


def _round_up(x, m):
    return ((x + m - 1) // m) * m


# ---------------------------------------------------------------------------
# Kernel
# ---------------------------------------------------------------------------
def d2rl_kernel(x_ref, win_ref, bin_ref, wh_ref, wxf_ref, bb_ref,
                wout_ref, bout_ref, o_ref, *, num_layers, hidden):
    """Fused D2RL forward for one batch tile.

    x_ref:    [tm, I_pad]    f32  (cast to bf16 in-kernel)
    win_ref:  [I_pad, H]     bf16     bin_ref:  [1, H]        f32
    wh_ref:   [L, H, H]      bf16     wxf_ref:  [I_pad, L*H]  bf16
    bb_ref:   [L, 1, H]      f32
    wout_ref: [H, O_pad]     bf16     bout_ref: [1, O_pad]    f32
    o_ref:    [tm, O_pad]    f32
    """
    xu = x_ref[...].astype(jnp.bfloat16)                  # single f32 HBM read, cast on-chip

    # All skip terms in one wide MXU pass: skip[:, i*H:(i+1)*H] == xu @ Wx_i.
    skip = jnp.dot(xu, wxf_ref[...], preferred_element_type=jnp.float32)

    # Input layer: relu(xu @ W_in + b_in); bias/relu in f32, h stored bf16.
    h = jnp.dot(xu, win_ref[...], preferred_element_type=jnp.float32) + bin_ref[...]
    h = jnp.maximum(h, 0.0).astype(jnp.bfloat16)

    # Body layers: relu(cat([h, xu]) @ W_i + b_i) == relu(h @ Wh_i + skip_i + b_i).
    for i in range(num_layers):                           # static unroll
        z = (jnp.dot(h, wh_ref[i], preferred_element_type=jnp.float32)
             + skip[:, i * hidden:(i + 1) * hidden]
             + bb_ref[i])
        h = jnp.maximum(z, 0.0).astype(jnp.bfloat16)

    # Output layer (lane-dense: O padded to a multiple of 128 at prep time).
    y = jnp.dot(h, wout_ref[...], preferred_element_type=jnp.float32) + bout_ref[...]
    o_ref[...] = y.astype(o_ref.dtype)


# ---------------------------------------------------------------------------
# VMEM footprint estimate (weights single-buffered, x/out tiles double-buffered)
# ---------------------------------------------------------------------------
def _vmem_bytes(tm, i_pad, hidden, num_layers, o_pad):
    weights = 2 * (i_pad * hidden + num_layers * hidden * hidden
                   + i_pad * num_layers * hidden + hidden * o_pad)   # bf16, 1-buffered
    biases = 4 * ((num_layers + 1) * hidden + o_pad)
    io_tiles = 2 * tm * i_pad * 4 + 2 * tm * o_pad * 4               # double-buffered x / out
    activ = tm * num_layers * hidden * 4 + 3 * tm * hidden * 4       # skip (f32) + h/z live set
    return weights + biases + io_tiles + activ


# ---------------------------------------------------------------------------
# Forward wrapper
# ---------------------------------------------------------------------------
@functools.partial(jax.jit, static_argnames=("num_outputs", "tile_m"))
def d2rl_forward(x, prep_params, *, num_outputs, tile_m=1024):
    """Run D2RLNet forward via the fused Pallas kernel, tiled over the batch.

    `prep_params` must come from prepare_d2rl_params (bf16 weights, 128-padded dims)."""
    win_b, bin_f, wh_b, wxf_b, bb_f, wout_b, bout_f = prep_params

    batch = x.shape[0]
    xu = x.reshape(batch, -1)                      # torch.flatten(x, start_dim=1)
    num_inputs = xu.shape[1]
    i_pad, hidden = win_b.shape
    num_layers = wh_b.shape[0]
    o_pad = wout_b.shape[1]

    # --- batch tile selection (multiples of 16: bf16 sublane packing) ---------
    min_pad = _round_up(batch, 16)
    tm = min(_round_up(tile_m, 16), min_pad)
    # Split a single-step grid for the 2nd TensorCore (v7x) only when both halves
    # stay MXU-sized (>= 256 rows); on 1-TC v5e/v6e small splits are pure overhead.
    if min_pad // tm < 2 and min_pad >= 512:
        tm = _round_up(pl.cdiv(min_pad, 2), 16)
    # Shrink tiles if the VMEM footprint would blow the budget (v7x: 64 MiB physical).
    vmem_budget = 40 * 1024 * 1024
    while tm > 256 and _vmem_bytes(tm, i_pad, hidden, num_layers, o_pad) > vmem_budget:
        tm = max(256, _round_up(tm // 2, 16))
    # TODO(synk): if the stacked Wx alone exceeds the VMEM budget (very large
    # flattened inputs), add an inner K-tiling grid axis instead of keeping it resident.

    padded_batch = _round_up(batch, tm)
    grid = (padded_batch // tm,)

    # x keeps its input dtype; only zero-pad rows/cols.  bf16 cast happens in-kernel.
    xb = xu
    if padded_batch != batch or i_pad != num_inputs:
        xb = jnp.pad(xu, ((0, padded_batch - batch), (0, i_pad - num_inputs)))

    est = _vmem_bytes(tm, i_pad, hidden, num_layers, o_pad)
    vmem_limit = int(min(max(2 * est, 32 * 1024 * 1024), 48 * 1024 * 1024))

    # --- cost hint for XLA's scheduler ----------------------------------------
    flops = 2 * padded_batch * (i_pad * hidden
                                + num_layers * (hidden + i_pad) * hidden
                                + hidden * o_pad)
    bytes_accessed = (xb.size * xb.dtype.itemsize
                      + padded_batch * o_pad * 4
                      + (win_b.size + wh_b.size + wxf_b.size + wout_b.size) * 2
                      + (bin_f.size + bb_f.size + bout_f.size) * 4)
    cost = pl.CostEstimate(flops=flops, transcendentals=0,
                           bytes_accessed=bytes_accessed)

    def _const_spec(shape):
        # Grid-invariant operand: resident in VMEM for the whole grid, single-buffered.
        return pl.BlockSpec(shape, lambda i: (0,) * len(shape),
                            pipeline_mode=pl.Buffered(1))

    kernel = functools.partial(d2rl_kernel, num_layers=num_layers, hidden=hidden)

    out = pl.pallas_call(
        kernel,
        out_shape=jax.ShapeDtypeStruct((padded_batch, o_pad), jnp.float32),
        grid_spec=pltpu.PrefetchScalarGridSpec(
            num_scalar_prefetch=0,
            grid=grid,
            in_specs=[
                pl.BlockSpec((tm, i_pad), lambda i: (i, 0)),            # x tile (pipelined)
                _const_spec((i_pad, hidden)),                           # W_in
                _const_spec((1, hidden)),                               # b_in
                _const_spec((num_layers, hidden, hidden)),              # Wh (stacked)
                _const_spec((i_pad, num_layers * hidden)),              # Wx (flattened, 1 wide dot)
                _const_spec((num_layers, 1, hidden)),                   # body biases
                _const_spec((hidden, o_pad)),                           # W_out (padded)
                _const_spec((1, o_pad)),                                # b_out (padded)
            ],
            out_specs=pl.BlockSpec((tm, o_pad), lambda i: (i, 0)),
        ),
        compiler_params=pltpu.CompilerParams(
            dimension_semantics=("parallel",),
            vmem_limit_bytes=vmem_limit,
        ),
        cost_estimate=cost,
    )(xb, win_b, bin_f, wh_b, wxf_b, bb_f, wout_b, bout_f)

    return out[:batch, :num_outputs]


# ---------------------------------------------------------------------------
# Parameter construction / one-time kernel prep
# ---------------------------------------------------------------------------
def make_d2rl_params(key, num_inputs, num_outputs, hidden_dim=512, num_layers=4):
    """Xavier-uniform weights / zero biases, stored as [in, out] (y = x @ W + b)."""
    keys = jax.random.split(key, num_layers + 2)

    def xavier(k, shape):
        fan_in, fan_out = shape
        limit = jnp.sqrt(6.0 / (fan_in + fan_out))
        return jax.random.uniform(k, shape, jnp.float32, -limit, limit)

    in_dim = num_inputs + hidden_dim
    w_in = xavier(keys[0], (num_inputs, hidden_dim))
    b_in = jnp.zeros((1, hidden_dim), jnp.float32)

    # Body weight for layer i (PyTorch [H, H+I]) stored transposed and split:
    #   first H rows multiply h (Wh), last I rows multiply xu (Wx) — matches cat([h, xu]).
    wh_list, wx_list = [], []
    for i in range(num_layers):
        w_full = xavier(keys[1 + i], (in_dim, hidden_dim))
        wh_list.append(w_full[:hidden_dim])
        wx_list.append(w_full[hidden_dim:])
    wh = jnp.stack(wh_list)                               # [L, H, H]
    wx = jnp.stack(wx_list)                               # [L, I, H]
    bb = jnp.zeros((num_layers, 1, hidden_dim), jnp.float32)

    w_out = xavier(keys[-1], (hidden_dim, num_outputs))
    b_out = jnp.zeros((1, num_outputs), jnp.float32)
    return (w_in, b_in, wh, wx, bb, w_out, b_out)


def prepare_d2rl_params(params):
    """One-time prep: pad I/O dims to 128 lanes, cast weights to bf16, flatten Wx.

    Done outside the per-call path so the f32->bf16 conversions and the padding are
    not re-materialized (and re-read from HBM) on every forward call.
    """
    w_in, b_in, wh, wx, bb, w_out, b_out = params
    num_inputs, hidden = w_in.shape
    num_layers = wh.shape[0]
    num_outputs = w_out.shape[1]
    i_pad = _round_up(num_inputs, 128)
    o_pad = _round_up(num_outputs, 128)

    win_b = jnp.pad(w_in, ((0, i_pad - num_inputs), (0, 0))).astype(jnp.bfloat16)
    bin_f = b_in.astype(jnp.float32)

    wh_b = wh.astype(jnp.bfloat16)                                   # [L, H, H]
    wx_pad = jnp.pad(wx, ((0, 0), (0, i_pad - num_inputs), (0, 0)))  # [L, I_pad, H]
    # Flatten so one wide dot computes every layer's skip term:
    #   wxf[:, i*H:(i+1)*H] == Wx_i   =>   (xu @ wxf)[:, i*H:(i+1)*H] == xu @ Wx_i.
    wxf_b = jnp.transpose(wx_pad, (1, 0, 2)).reshape(i_pad, num_layers * hidden)
    wxf_b = wxf_b.astype(jnp.bfloat16)
    bb_f = bb.astype(jnp.float32)

    wout_b = jnp.pad(w_out, ((0, 0), (0, o_pad - num_outputs))).astype(jnp.bfloat16)
    bout_f = jnp.pad(b_out, ((0, 0), (0, o_pad - num_outputs))).astype(jnp.float32)

    return jax.device_put((win_b, bin_f, wh_b, wxf_b, bb_f, wout_b, bout_f))


def d2rl_reference(x, params):
    """Pure-JAX f32 reference of the PyTorch forward pass."""
    w_in, b_in, wh, wx, bb, w_out, b_out = params
    xu = x.reshape(x.shape[0], -1)
    h = jax.nn.relu(xu @ w_in + b_in)
    for i in range(wh.shape[0]):
        h = jax.nn.relu(h @ wh[i] + xu @ wx[i] + bb[i])
    return h @ w_out + b_out


if __name__ == "__main__":
    key = jax.random.PRNGKey(0)
    k_x, k_p = jax.random.split(key)

    batch = 16
    feat_shape = (4, 8)          # flattened -> num_inputs = 32
    num_inputs = 4 * 8
    hidden_dim = 128             # multiple of 128 lanes (module default is 512)
    num_layers = 4
    num_outputs = 8

    x = jax.random.normal(k_x, (batch,) + feat_shape, jnp.float32)
    params = make_d2rl_params(k_p, num_inputs, num_outputs, hidden_dim, num_layers)
    prepped = prepare_d2rl_params(params)      # one-time bf16 cast / 128-lane padding

    out = d2rl_forward(x, prepped, num_outputs=num_outputs)
    out = jax.block_until_ready(out)

    ref = d2rl_reference(x, params)
    assert out.shape == (batch, num_outputs)
    max_err = float(jnp.max(jnp.abs(out - ref)))
    assert max_err < 5e-2, f"mismatch vs reference: max abs err {max_err}"

    print("KERNEL_OK")
</pallas_src>

<mosaic_0001>
module attributes {stable_mosaic.version = 11 : i64} {
  func.func @d2rl_kernel(%arg0: i32, %arg1: memref<16x128xf32, #tpu.memory_space<vmem>>, %arg2: memref<128x128xbf16, #tpu.memory_space<vmem>>, %arg3: memref<1x128xf32, #tpu.memory_space<vmem>>, %arg4: memref<4x128x128xbf16, #tpu.memory_space<vmem>>, %arg5: memref<128x512xbf16, #tpu.memory_space<vmem>>, %arg6: memref<4x1x128xf32, #tpu.memory_space<vmem>>, %arg7: memref<128x128xbf16, #tpu.memory_space<vmem>>, %arg8: memref<1x128xf32, #tpu.memory_space<vmem>>, %arg9: memref<16x128xf32, #tpu.memory_space<vmem>>) attributes {dimension_semantics = [#tpu.dimension_semantics<parallel>], iteration_bounds = array<i64: 1>, scalar_prefetch = 0 : i64, scratch_operands = 0 : i64, tpu.core_type = #tpu.core_type<tc>, window_params = [{transform_indices = @transform_0, window_bounds = array<i64: 16, 128>}, {pipeline_mode = #tpu.pipeline_mode<synchronous>, transform_indices = @transform_1, window_bounds = array<i64: 128, 128>}, {pipeline_mode = #tpu.pipeline_mode<synchronous>, transform_indices = @transform_2, window_bounds = array<i64: 1, 128>}, {pipeline_mode = #tpu.pipeline_mode<synchronous>, transform_indices = @transform_3, window_bounds = array<i64: 4, 128, 128>}, {pipeline_mode = #tpu.pipeline_mode<synchronous>, transform_indices = @transform_4, window_bounds = array<i64: 128, 512>}, {pipeline_mode = #tpu.pipeline_mode<synchronous>, transform_indices = @transform_5, window_bounds = array<i64: 4, 1, 128>}, {pipeline_mode = #tpu.pipeline_mode<synchronous>, transform_indices = @transform_6, window_bounds = array<i64: 128, 128>}, {pipeline_mode = #tpu.pipeline_mode<synchronous>, transform_indices = @transform_7, window_bounds = array<i64: 1, 128>}, {transform_indices = @transform_8, window_bounds = array<i64: 16, 128>}]} {
    %c0 = arith.constant 0 : index
    %c0_0 = arith.constant 0 : index
    %0 = vector.load %arg1[%c0, %c0_0] : memref<16x128xf32, #tpu.memory_space<vmem>>, vector<16x128xf32>
    %1 = arith.truncf %0 : vector<16x128xf32> to vector<16x128xbf16>
    %c0_1 = arith.constant 0 : index
    %c0_2 = arith.constant 0 : index
    %2 = vector.load %arg5[%c0_1, %c0_2] : memref<128x512xbf16, #tpu.memory_space<vmem>>, vector<128x512xbf16>
    %cst = arith.constant dense<0.000000e+00> : vector<16x512xf32>
    %3 = tpu.matmul %1, %2, %cst {dimension_numbers = #tpu.dot_dimension_numbers<[1], [0], [0], [1], [0, 0, 1, 1], [], []>} : vector<16x128xbf16>, vector<128x512xbf16>, vector<16x512xf32> -> vector<16x512xf32>
    %c0_3 = arith.constant 0 : index
    %c0_4 = arith.constant 0 : index
    %4 = vector.load %arg2[%c0_3, %c0_4] : memref<128x128xbf16, #tpu.memory_space<vmem>>, vector<128x128xbf16>
    %cst_5 = arith.constant dense<0.000000e+00> : vector<16x128xf32>
    %5 = tpu.matmul %1, %4, %cst_5 {dimension_numbers = #tpu.dot_dimension_numbers<[1], [0], [0], [1], [0, 0, 1, 1], [], []>} : vector<16x128xbf16>, vector<128x128xbf16>, vector<16x128xf32> -> vector<16x128xf32>
    %c0_6 = arith.constant 0 : index
    %c0_7 = arith.constant 0 : index
    %6 = vector.load %arg3[%c0_6, %c0_7] : memref<1x128xf32, #tpu.memory_space<vmem>>, vector<1x128xf32>
    %7 = vector.broadcast %6 : vector<1x128xf32> to vector<16x128xf32>
    %8 = arith.addf %5, %7 : vector<16x128xf32>
    %cst_8 = arith.constant 0.000000e+00 : f32
    %9 = vector.broadcast %cst_8 : f32 to vector<16x128xf32>
    %10 = arith.maximumf %8, %9 : vector<16x128xf32>
    %11 = arith.truncf %10 : vector<16x128xf32> to vector<16x128xbf16>
    %c0_9 = arith.constant 0 : index
    %c0_10 = arith.constant 0 : index
    %c0_11 = arith.constant 0 : index
    %12 = vector.load %arg4[%c0_9, %c0_10, %c0_11] : memref<4x128x128xbf16, #tpu.memory_space<vmem>>, vector<1x128x128xbf16>
    %13 = vector.shape_cast %12 : vector<1x128x128xbf16> to vector<128x128xbf16>
    %cst_12 = arith.constant dense<0.000000e+00> : vector<16x128xf32>
    %14 = tpu.matmul %11, %13, %cst_12 {dimension_numbers = #tpu.dot_dimension_numbers<[1], [0], [0], [1], [0, 0, 1, 1], [], []>} : vector<16x128xbf16>, vector<128x128xbf16>, vector<16x128xf32> -> vector<16x128xf32>
    %15 = vector.extract_strided_slice %3 {offsets = [0, 0], sizes = [16, 128], strides = [1, 1]} : vector<16x512xf32> to vector<16x128xf32>
    %16 = arith.addf %14, %15 : vector<16x128xf32>
    %c0_13 = arith.constant 0 : index
    %c0_14 = arith.constant 0 : index
    %c0_15 = arith.constant 0 : index
    %17 = vector.load %arg6[%c0_13, %c0_14, %c0_15] : memref<4x1x128xf32, #tpu.memory_space<vmem>>, vector<1x1x128xf32>
    %18 = vector.shape_cast %17 : vector<1x1x128xf32> to vector<1x128xf32>
    %19 = vector.broadcast %18 : vector<1x128xf32> to vector<16x128xf32>
    %20 = arith.addf %16, %19 : vector<16x128xf32>
    %cst_16 = arith.constant 0.000000e+00 : f32
    %21 = vector.broadcast %cst_16 : f32 to vector<16x128xf32>
    %22 = arith.maximumf %20, %21 : vector<16x128xf32>
    %23 = arith.truncf %22 : vector<16x128xf32> to vector<16x128xbf16>
    %c1 = arith.constant 1 : index
    %c0_17 = arith.constant 0 : index
    %c0_18 = arith.constant 0 : index
    %24 = vector.load %arg4[%c1, %c0_17, %c0_18] : memref<4x128x128xbf16, #tpu.memory_space<vmem>>, vector<1x128x128xbf16>
    %25 = vector.shape_cast %24 : vector<1x128x128xbf16> to vector<128x128xbf16>
    %cst_19 = arith.constant dense<0.000000e+00> : vector<16x128xf32>
    %26 = tpu.matmul %23, %25, %cst_19 {dimension_numbers = #tpu.dot_dimension_numbers<[1], [0], [0], [1], [0, 0, 1, 1], [], []>} : vector<16x128xbf16>, vector<128x128xbf16>, vector<16x128xf32> -> vector<16x128xf32>
    %27 = vector.extract_strided_slice %3 {offsets = [0, 128], sizes = [16, 128], strides = [1, 1]} : vector<16x512xf32> to vector<16x128xf32>
    %28 = arith.addf %26, %27 : vector<16x128xf32>
    %c1_20 = arith.constant 1 : index
    %c0_21 = arith.constant 0 : index
    %c0_22 = arith.constant 0 : index
    %29 = vector.load %arg6[%c1_20, %c0_21, %c0_22] : memref<4x1x128xf32, #tpu.memory_space<vmem>>, vector<1x1x128xf32>
    %30 = vector.shape_cast %29 : vector<1x1x128xf32> to vector<1x128xf32>
    %31 = vector.broadcast %30 : vector<1x128xf32> to vector<16x128xf32>
    %32 = arith.addf %28, %31 : vector<16x128xf32>
    %cst_23 = arith.constant 0.000000e+00 : f32
    %33 = vector.broadcast %cst_23 : f32 to vector<16x128xf32>
    %34 = arith.maximumf %32, %33 : vector<16x128xf32>
    %35 = arith.truncf %34 : vector<16x128xf32> to vector<16x128xbf16>
    %c2 = arith.constant 2 : index
    %c0_24 = arith.constant 0 : index
    %c0_25 = arith.constant 0 : index
    %36 = vector.load %arg4[%c2, %c0_24, %c0_25] : memref<4x128x128xbf16, #tpu.memory_space<vmem>>, vector<1x128x128xbf16>
    %37 = vector.shape_cast %36 : vector<1x128x128xbf16> to vector<128x128xbf16>
    %cst_26 = arith.constant dense<0.000000e+00> : vector<16x128xf32>
    %38 = tpu.matmul %35, %37, %cst_26 {dimension_numbers = #tpu.dot_dimension_numbers<[1], [0], [0], [1], [0, 0, 1, 1], [], []>} : vector<16x128xbf16>, vector<128x128xbf16>, vector<16x128xf32> -> vector<16x128xf32>
    %39 = vector.extract_strided_slice %3 {offsets = [0, 256], sizes = [16, 128], strides = [1, 1]} : vector<16x512xf32> to vector<16x128xf32>
    %40 = arith.addf %38, %39 : vector<16x128xf32>
    %c2_27 = arith.constant 2 : index
    %c0_28 = arith.constant 0 : index
    %c0_29 = arith.constant 0 : index
    %41 = vector.load %arg6[%c2_27, %c0_28, %c0_29] : memref<4x1x128xf32, #tpu.memory_space<vmem>>, vector<1x1x128xf32>
    %42 = vector.shape_cast %41 : vector<1x1x128xf32> to vector<1x128xf32>
    %43 = vector.broadcast %42 : vector<1x128xf32> to vector<16x128xf32>
    %44 = arith.addf %40, %43 : vector<16x128xf32>
    %cst_30 = arith.constant 0.000000e+00 : f32
    %45 = vector.broadcast %cst_30 : f32 to vector<16x128xf32>
    %46 = arith.maximumf %44, %45 : vector<16x128xf32>
    %47 = arith.truncf %46 : vector<16x128xf32> to vector<16x128xbf16>
    %c3 = arith.constant 3 : index
    %c0_31 = arith.constant 0 : index
    %c0_32 = arith.constant 0 : index
    %48 = vector.load %arg4[%c3, %c0_31, %c0_32] : memref<4x128x128xbf16, #tpu.memory_space<vmem>>, vector<1x128x128xbf16>
    %49 = vector.shape_cast %48 : vector<1x128x128xbf16> to vector<128x128xbf16>
    %cst_33 = arith.constant dense<0.000000e+00> : vector<16x128xf32>
    %50 = tpu.matmul %47, %49, %cst_33 {dimension_numbers = #tpu.dot_dimension_numbers<[1], [0], [0], [1], [0, 0, 1, 1], [], []>} : vector<16x128xbf16>, vector<128x128xbf16>, vector<16x128xf32> -> vector<16x128xf32>
    %51 = vector.extract_strided_slice %3 {offsets = [0, 384], sizes = [16, 128], strides = [1, 1]} : vector<16x512xf32> to vector<16x128xf32>
    %52 = arith.addf %50, %51 : vector<16x128xf32>
    %c3_34 = arith.constant 3 : index
    %c0_35 = arith.constant 0 : index
    %c0_36 = arith.constant 0 : index
    %53 = vector.load %arg6[%c3_34, %c0_35, %c0_36] : memref<4x1x128xf32, #tpu.memory_space<vmem>>, vector<1x1x128xf32>
    %54 = vector.shape_cast %53 : vector<1x1x128xf32> to vector<1x128xf32>
    %55 = vector.broadcast %54 : vector<1x128xf32> to vector<16x128xf32>
    %56 = arith.addf %52, %55 : vector<16x128xf32>
    %cst_37 = arith.constant 0.000000e+00 : f32
    %57 = vector.broadcast %cst_37 : f32 to vector<16x128xf32>
    %58 = arith.maximumf %56, %57 : vector<16x128xf32>
    %59 = arith.truncf %58 : vector<16x128xf32> to vector<16x128xbf16>
    %c0_38 = arith.constant 0 : index
    %c0_39 = arith.constant 0 : index
    %60 = vector.load %arg7[%c0_38, %c0_39] : memref<128x128xbf16, #tpu.memory_space<vmem>>, vector<128x128xbf16>
    %cst_40 = arith.constant dense<0.000000e+00> : vector<16x128xf32>
    %61 = tpu.matmul %59, %60, %cst_40 {dimension_numbers = #tpu.dot_dimension_numbers<[1], [0], [0], [1], [0, 0, 1, 1], [], []>} : vector<16x128xbf16>, vector<128x128xbf16>, vector<16x128xf32> -> vector<16x128xf32>
    %c0_41 = arith.constant 0 : index
    %c0_42 = arith.constant 0 : index
    %62 = vector.load %arg8[%c0_41, %c0_42] : memref<1x128xf32, #tpu.memory_space<vmem>>, vector<1x128xf32>
    %63 = vector.broadcast %62 : vector<1x128xf32> to vector<16x128xf32>
    %64 = arith.addf %61, %63 : vector<16x128xf32>
    %c0_43 = arith.constant 0 : index
    %c0_44 = arith.constant 0 : index
    %65 = vector.load %arg9[%c0_43, %c0_44] : memref<16x128xf32, #tpu.memory_space<vmem>>, vector<16x128xf32>
    tpu.vector_store %arg9[%c0_43, %c0_44], %64 {strides = array<i32>} : memref<16x128xf32, #tpu.memory_space<vmem>>, vector<16x128xf32>,
    return
  }
  func.func @transform_0(%arg0: i32) -> (i32, i32) {
    %c0_i32 = arith.constant 0 : i32
    %c0_i32_0 = arith.constant 0 : i32
    return %arg0, %c0_i32 : i32, i32
  }
  func.func @transform_1(%arg0: i32) -> (i32, i32) {
    %c0_i32 = arith.constant 0 : i32
    %c0_i32_0 = arith.constant 0 : i32
    %c0_i32_1 = arith.constant 0 : i32
    return %c0_i32, %c0_i32_0 : i32, i32
  }
  func.func @transform_2(%arg0: i32) -> (i32, i32) {
    %c0_i32 = arith.constant 0 : i32
    %c0_i32_0 = arith.constant 0 : i32
    %c0_i32_1 = arith.constant 0 : i32
    return %c0_i32, %c0_i32_0 : i32, i32
  }
  func.func @transform_3(%arg0: i32) -> (i32, i32, i32) {
    %c0_i32 = arith.constant 0 : i32
    %c0_i32_0 = arith.constant 0 : i32
    %c0_i32_1 = arith.constant 0 : i32
    %c0_i32_2 = arith.constant 0 : i32
    return %c0_i32, %c0_i32_0, %c0_i32_1 : i32, i32, i32
  }
  func.func @transform_4(%arg0: i32) -> (i32, i32) {
    %c0_i32 = arith.constant 0 : i32
    %c0_i32_0 = arith.constant 0 : i32
    %c0_i32_1 = arith.constant 0 : i32
    return %c0_i32, %c0_i32_0 : i32, i32
  }
  func.func @transform_5(%arg0: i32) -> (i32, i32, i32) {
    %c0_i32 = arith.constant 0 : i32
    %c0_i32_0 = arith.constant 0 : i32
    %c0_i32_1 = arith.constant 0 : i32
    %c0_i32_2 = arith.constant 0 : i32
    return %c0_i32, %c0_i32_0, %c0_i32_1 : i32, i32, i32
  }
  func.func @transform_6(%arg0: i32) -> (i32, i32) {
    %c0_i32 = arith.constant 0 : i32
    %c0_i32_0 = arith.constant 0 : i32
    %c0_i32_1 = arith.constant 0 : i32
    return %c0_i32, %c0_i32_0 : i32, i32
  }
  func.func @transform_7(%arg0: i32) -> (i32, i32) {
    %c0_i32 = arith.constant 0 : i32
    %c0_i32_0 = arith.constant 0 : i32
    %c0_i32_1 = arith.constant 0 : i32
    return %c0_i32, %c0_i32_0 : i32, i32
  }
  func.func @transform_8(%arg0: i32) -> (i32, i32) {
    %c0_i32 = arith.constant 0 : i32
    %c0_i32_0 = arith.constant 0 : i32
    return %arg0, %c0_i32 : i32, i32
  }
}

</mosaic_0001>

<llo_original>
// kernel: d2rl_forward.1
$region0: #{d2rl_forward.1}
  #allocation0 [shape = 'u32[]', space=smem, size = 0x4, offset = 0x4, fixed_abs, tag = 'smem constant byte address 0x4 - core index']
  #allocation1 [shape = 'u32[72,128]{1,0:T(1,128)}', space=vmem, size = 0x9000, scoped, tag = 'internal scratch']
  %s0 = inlined_call_operand.vmem [shape: f32[16,128], index: 0, kind: input, shape index: {}]
  %s1 = inlined_call_operand.vmem [shape: bf16[128,128], index: 1, kind: input, shape index: {}]
  %s2 = inlined_call_operand.vmem [shape: f32[1,128], index: 2, kind: input, shape index: {}]
  %s3 = inlined_call_operand.hbm [shape: bf16[4,128,128], index: 3, kind: input, shape index: {}]
  %s4 = inlined_call_operand.hbm [shape: bf16[128,512], index: 4, kind: input, shape index: {}]
  %s5 = inlined_call_operand.vmem [shape: f32[4,1,128], index: 5, kind: input, shape index: {}]
  %s6 = inlined_call_operand.hbm [shape: bf16[128,128], index: 6, kind: input, shape index: {}]
  %s7 = inlined_call_operand.vmem [shape: f32[1,128], index: 7, kind: input, shape index: {}]
  %s8 = inlined_call_operand.vmem [shape: f32[16,128], index: 8, kind: output, shape index: {}]
  %s9 = sld [smem:[#allocation0]]
  $region54: #{d2rl_forward.1} parent=0
    _
  %s11 = ssub.s32 1, %s9
  %s12 = scalar_select 0, %s11, %s9
  $region1: #{d2rl_forward.1} parent=0
    #allocation2 [shape = 'u8[131072]{0}', space=vmem, size = 0x20000, scoped, tag = 'input window, operand 3, single buffered']
    #allocation3 [shape = 's32[1]{0}', space=sflag, size = 0x4, scoped, tag = 'scoped memory for d2rl_forward.1']
    #allocation4 [shape = 'u8[131072]{0}', space=vmem, size = 0x20000, scoped, tag = 'input window, operand 4, single buffered']
    #allocation5 [shape = 's32[1]{0}', space=sflag, size = 0x4, scoped, tag = 'scoped memory for d2rl_forward.1']
    #allocation6 [shape = 'u8[32768]{0}', space=vmem, size = 0x8000, scoped, tag = 'input window, operand 6, single buffered']
    %13 = vsyncpa [#allocation3], 0
    %14 = vsyncpa [#allocation5], 0
    // Predicated region
    $region2: #{d2rl_forward.1} parent=1 // pred_check
      _
    $region3: #{d2rl_forward.1} parent=1 // pred_check_branch
      %16 = sbr.rel (0) target = $region5
    $region4: #{d2rl_forward.1} parent=1 // pred_region
      _
    $region5: #{d2rl_forward.1} parent=1 // pred_fallthru
      _
    // Predicated region
    $region6: #{d2rl_forward.1} parent=1 // pred_check
      _
    $region7: #{d2rl_forward.1} parent=1 // pred_check_branch
      %18 = sbr.rel (0) target = $region9
    $region8: #{d2rl_forward.1} parent=1 // pred_region
      _
    $region9: #{d2rl_forward.1} parent=1 // pred_fallthru
      _
    // Predicated region
    $region10: #{d2rl_forward.1} parent=1 // pred_check
      _
    $region11: #{d2rl_forward.1} parent=1 // pred_check_branch
      %20 = sbr.rel (0) target = $region13
    $region12: #{d2rl_forward.1} parent=1 // pred_region
      _
    $region13: #{d2rl_forward.1} parent=1 // pred_fallthru
      _
    // Predicated region
    $region14: #{d2rl_forward.1} parent=1 // pred_check
      _
    $region15: #{d2rl_forward.1} parent=1 // pred_check_branch
      %22 = sbr.rel (0) target = $region17
    $region16: #{d2rl_forward.1} parent=1 // pred_region
      %24 = vsyncadd [#allocation3], 0
      %s25 = sshll.u32 %s3, 4
      %s26 = int_to_ptr.hbm [resolvable:$true] %s25
      %s27 = sshll.u32 [#allocation2], 4
      %s28 = int_to_ptr.vmem [resolvable:$true] %s27
      %33 = dma.hbm_to_vmem [thread:$0]  %s26, 4096, %s28, [#allocation3], 64, 64, 4
    $region17: #{d2rl_forward.1} parent=1 // pred_fallthru
      _
    // Predicated region
    $region18: #{d2rl_forward.1} parent=1 // pred_check
      _
    $region19: #{d2rl_forward.1} parent=1 // pred_check_branch
      %35 = sbr.rel (0) target = $region21
    $region20: #{d2rl_forward.1} parent=1 // pred_region
      %37 = vsyncadd [#allocation5], 0
      %s38 = sshll.u32 %s4, 4
      %s39 = int_to_ptr.hbm [resolvable:$true] %s38
      %s40 = sshll.u32 [#allocation4], 4
      %s41 = int_to_ptr.vmem [resolvable:$true] %s40
      %46 = dma.hbm_to_vmem [thread:$0]  %s39, 4096, %s41, [#allocation5], 256, 256, 16
    $region21: #{d2rl_forward.1} parent=1 // pred_fallthru
      _
    // Predicated region
    $region22: #{d2rl_forward.1} parent=1 // pred_check
      _
    $region23: #{d2rl_forward.1} parent=1 // pred_check_branch
      %48 = sbr.rel (0) target = $region25
    $region24: #{d2rl_forward.1} parent=1 // pred_region
      _
    $region25: #{d2rl_forward.1} parent=1 // pred_fallthru
      _
    // Predicated region
    $region26: #{d2rl_forward.1} parent=1 // pred_check
      _
    $region27: #{d2rl_forward.1} parent=1 // pred_check_branch
      %50 = sbr.rel (0) target = $region29
    $region28: #{d2rl_forward.1} parent=1 // pred_region
      %52 = vsyncadd [#allocation5], 0
      %s53 = sshll.u32 %s6, 4
      %s54 = int_to_ptr.hbm [resolvable:$true] %s53
      %s55 = sshll.u32 [#allocation6], 4
      %s56 = int_to_ptr.vmem [resolvable:$true] %s55
      %61 = dma.hbm_to_vmem [thread:$0]  %s54, 1024, %s56, [#allocation5], 64, 64, 4
    $region29: #{d2rl_forward.1} parent=1 // pred_fallthru
      _
    // Predicated region
    $region30: #{d2rl_forward.1} parent=1 // pred_check
      _
    $region31: #{d2rl_forward.1} parent=1 // pred_check_branch
      %63 = sbr.rel (0) target = $region33
    $region32: #{d2rl_forward.1} parent=1 // pred_region
      _
    $region33: #{d2rl_forward.1} parent=1 // pred_fallthru
      _
    // Predicated region
    $region34: #{d2rl_forward.1} parent=1 // pred_check
      _
    $region35: #{d2rl_forward.1} parent=1 // pred_check_branch
      %65 = sbr.rel (0) target = $region37
    $region36: #{d2rl_forward.1} parent=1 // pred_region
      %67 = dma.done [#allocation3], 4096
    $region37: #{d2rl_forward.1} parent=1 // pred_fallthru
      _
    // Predicated region
    $region38: #{d2rl_forward.1} parent=1 // pred_check
      _
    $region39: #{d2rl_forward.1} parent=1 // pred_check_branch
      %69 = sbr.rel (0) target = $region41
    $region40: #{d2rl_forward.1} parent=1 // pred_region
      %71 = dma.done [#allocation5], 4096
    $region41: #{d2rl_forward.1} parent=1 // pred_fallthru
      _
    // Predicated region
    $region42: #{d2rl_forward.1} parent=1 // pred_check
      _
    $region43: #{d2rl_forward.1} parent=1 // pred_check_branch
      %73 = sbr.rel (0) target = $region45
    $region44: #{d2rl_forward.1} parent=1 // pred_region
      %75 = dma.done [#allocation5], 1024
    $region45: #{d2rl_forward.1} parent=1 // pred_fallthru
      _
    %v76 = vld [vmem:[%s0] sm:$0xff]
    %v77 = vld [vmem:[%s0 + $0x8] sm:$0xff]
    %v78 = vpack.c.bf16 %v77, %v76
    %v79 = vld [vmem:[#allocation4] sm:$0xff]
    %v80 = vld [vmem:[#allocation4 + $0x8] sm:$0xff]
    %v81 = vld [vmem:[#allocation4 + $0x10] sm:$0xff]
    %v82 = vld [vmem:[#allocation4 + $0x18] sm:$0xff]
    %v83 = vld [vmem:[#allocation4 + $0x20] sm:$0xff]
    %v84 = vld [vmem:[#allocation4 + $0x28] sm:$0xff]
    %v85 = vld [vmem:[#allocation4 + $0x30] sm:$0xff]
    %v86 = vld [vmem:[#allocation4 + $0x38] sm:$0xff]
    %v87 = vld [vmem:[#allocation4 + $0x40] sm:$0xff]
    %v88 = vld [vmem:[#allocation4 + $0x48] sm:$0xff]
    %v89 = vld [vmem:[#allocation4 + $0x50] sm:$0xff]
    %v90 = vld [vmem:[#allocation4 + $0x58] sm:$0xff]
    %v91 = vld [vmem:[#allocation4 + $0x60] sm:$0xff]
    %v92 = vld [vmem:[#allocation4 + $0x68] sm:$0xff]
    %v93 = vld [vmem:[#allocation4 + $0x70] sm:$0xff]
    %v94 = vld [vmem:[#allocation4 + $0x78] sm:$0xff]
    %v95 = vld [vmem:[#allocation4 + $0x80] sm:$0xff]
    %v96 = vld [vmem:[#allocation4 + $0x88] sm:$0xff]
    %v97 = vld [vmem:[#allocation4 + $0x90] sm:$0xff]
    %v98 = vld [vmem:[#allocation4 + $0x98] sm:$0xff]
    %v99 = vld [vmem:[#allocation4 + $0xa0] sm:$0xff]
    %v100 = vld [vmem:[#allocation4 + $0xa8] sm:$0xff]
    %v101 = vld [vmem:[#allocation4 + $0xb0] sm:$0xff]
    %v102 = vld [vmem:[#allocation4 + $0xb8] sm:$0xff]
    %v103 = vld [vmem:[#allocation4 + $0xc0] sm:$0xff]
    %v104 = vld [vmem:[#allocation4 + $0xc8] sm:$0xff]
    %v105 = vld [vmem:[#allocation4 + $0xd0] sm:$0xff]
    %v106 = vld [vmem:[#allocation4 + $0xd8] sm:$0xff]
    %v107 = vld [vmem:[#allocation4 + $0xe0] sm:$0xff]
    %v108 = vld [vmem:[#allocation4 + $0xe8] sm:$0xff]
    %v109 = vld [vmem:[#allocation4 + $0xf0] sm:$0xff]
    %v110 = vld [vmem:[#allocation4 + $0xf8] sm:$0xff]
    %v143 = vunpack.c.l.b16 %v79
    %v144 = vunpack.c.h.b16 %v79
    %v145 = vunpack.c.l.b16 %v80
    %v146 = vunpack.c.h.b16 %v80
    %v147 = vunpack.c.l.b16 %v81
    %v148 = vunpack.c.h.b16 %v81
    %v149 = vunpack.c.l.b16 %v82
    %v150 = vunpack.c.h.b16 %v82
    %v151 = vunpack.c.l.b16 %v83
    %v152 = vunpack.c.h.b16 %v83
    %v153 = vunpack.c.l.b16 %v84
    %v154 = vunpack.c.h.b16 %v84
    %v155 = vunpack.c.l.b16 %v85
    %v156 = vunpack.c.h.b16 %v85
    %v157 = vunpack.c.l.b16 %v86
    %v158 = vunpack.c.h.b16 %v86
    %v159 = vunpack.c.l.b16 %v87
    %v160 = vunpack.c.h.b16 %v87
    %v161 = vunpack.c.l.b16 %v88
    %v162 = vunpack.c.h.b16 %v88
    %v163 = vunpack.c.l.b16 %v89
    %v164 = vunpack.c.h.b16 %v89
    %v165 = vunpack.c.l.b16 %v90
    %v166 = vunpack.c.h.b16 %v90
    %v167 = vunpack.c.l.b16 %v91
    %v168 = vunpack.c.h.b16 %v91
    %v169 = vunpack.c.l.b16 %v92
    %v170 = vunpack.c.h.b16 %v92
    %v171 = vunpack.c.l.b16 %v93
    %v172 = vunpack.c.h.b16 %v93
    %v173 = vunpack.c.l.b16 %v94
    %v174 = vunpack.c.h.b16 %v94
    %v175 = vunpack.c.l.b16 %v95
    %v176 = vunpack.c.h.b16 %v95
    %v177 = vunpack.c.l.b16 %v96
    %v178 = vunpack.c.h.b16 %v96
    %v179 = vunpack.c.l.b16 %v97
    %v180 = vunpack.c.h.b16 %v97
    %v181 = vunpack.c.l.b16 %v98
    %v182 = vunpack.c.h.b16 %v98
    %v183 = vunpack.c.l.b16 %v99
    %v184 = vunpack.c.h.b16 %v99
    %v185 = vunpack.c.l.b16 %v100
    %v186 = vunpack.c.h.b16 %v100
    %v187 = vunpack.c.l.b16 %v101
    %v188 = vunpack.c.h.b16 %v101
    %v189 = vunpack.c.l.b16 %v102
    %v190 = vunpack.c.h.b16 %v102
    %v191 = vunpack.c.l.b16 %v103
    %v192 = vunpack.c.h.b16 %v103
    %v193 = vunpack.c.l.b16 %v104
    %v194 = vunpack.c.h.b16 %v104
    %v195 = vunpack.c.l.b16 %v105
    %v196 = vunpack.c.h.b16 %v105
    %v197 = vunpack.c.l.b16 %v106
    %v198 = vunpack.c.h.b16 %v106
    %v199 = vunpack.c.l.b16 %v107
    %v200 = vunpack.c.h.b16 %v107
    %v201 = vunpack.c.l.b16 %v108
    %v202 = vunpack.c.h.b16 %v108
    %v203 = vunpack.c.l.b16 %v109
    %v204 = vunpack.c.h.b16 %v109
    %v205 = vunpack.c.l.b16 %v110
    %v206 = vunpack.c.h.b16 %v110
    %v207 = vpack.c.b16 %v147, %v143
    %v208 = vpack.c.b16 %v148, %v144
    %v209 = vpack.c.b16 %v149, %v145
    %v210 = vpack.c.b16 %v150, %v146
    %v211 = vpack.c.b16 %v155, %v151
    %v212 = vpack.c.b16 %v156, %v152
    %v213 = vpack.c.b16 %v157, %v153
    %v214 = vpack.c.b16 %v158, %v154
    %v215 = vpack.c.b16 %v163, %v159
    %v216 = vpack.c.b16 %v164, %v160
    %v217 = vpack.c.b16 %v165, %v161
    %v218 = vpack.c.b16 %v166, %v162
    %v219 = vpack.c.b16 %v171, %v167
    %v220 = vpack.c.b16 %v172, %v168
    %v221 = vpack.c.b16 %v173, %v169
    %v222 = vpack.c.b16 %v174, %v170
    %v223 = vpack.c.b16 %v179, %v175
    %v224 = vpack.c.b16 %v180, %v176
    %v225 = vpack.c.b16 %v181, %v177
    %v226 = vpack.c.b16 %v182, %v178
    %v227 = vpack.c.b16 %v187, %v183
    %v228 = vpack.c.b16 %v188, %v184
    %v229 = vpack.c.b16 %v189, %v185
    %v230 = vpack.c.b16 %v190, %v186
    %v231 = vpack.c.b16 %v195, %v191
    %v232 = vpack.c.b16 %v196, %v192
    %v233 = vpack.c.b16 %v197, %v193
    %v234 = vpack.c.b16 %v198, %v194
    %v235 = vpack.c.b16 %v203, %v199
    %v236 = vpack.c.b16 %v204, %v200
    %v237 = vpack.c.b16 %v205, %v201
    %v238 = vpack.c.b16 %v206, %v202
    %271 = vmatpush.bf16.msra.mxu0 %v235
    %272 = vmatpush.bf16.msra.mxu0 %v231
    %273 = vmatpush.bf16.msra.mxu0 %v227
    %274 = vmatpush.bf16.msra.mxu0 %v223
    %275 = vmatpush.bf16.msra.mxu0 %v219
    %276 = vmatpush.bf16.msra.mxu0 %v215
    %277 = vmatpush.bf16.msra.mxu0 %v211
    %278 = vmatpush.bf16.msra.mxu0 %v207
    %279 = vmatmul.bf16.gmra.mxu0 %v78
    %v280 = vpop.f32.mrf.mxu0
    %v281 = vadd.f32 0.0, %v280
    %v282 = vpop.f32.mrf.mxu0
    %v283 = vadd.f32 0.0, %v282
    %284 = vdwg.mxu0
    %285 = vmatpush.bf16.msra.mxu0 %v236
    %286 = vmatpush.bf16.msra.mxu0 %v232
    %287 = vmatpush.bf16.msra.mxu0 %v228
    %288 = vmatpush.bf16.msra.mxu0 %v224
    %289 = vmatpush.bf16.msra.mxu0 %v220
    %290 = vmatpush.bf16.msra.mxu0 %v216
    %291 = vmatpush.bf16.msra.mxu0 %v212
    %292 = vmatpush.bf16.msra.mxu0 %v208
    %293 = vmatmul.bf16.gmra.mxu0 %v78
    %v294 = vpop.f32.mrf.mxu0
    %v295 = vadd.f32 0.0, %v294
    %v296 = vpop.f32.mrf.mxu0
    %v297 = vadd.f32 0.0, %v296
    %298 = vdwg.mxu0
    %299 = vmatpush.bf16.msra.mxu0 %v237
    %300 = vmatpush.bf16.msra.mxu0 %v233
    %301 = vmatpush.bf16.msra.mxu0 %v229
    %302 = vmatpush.bf16.msra.mxu0 %v225
    %303 = vmatpush.bf16.msra.mxu0 %v221
    %304 = vmatpush.bf16.msra.mxu0 %v217
    %305 = vmatpush.bf16.msra.mxu0 %v213
    %306 = vmatpush.bf16.msra.mxu0 %v209
    %307 = vmatmul.bf16.gmra.mxu0 %v78
    %v308 = vpop.f32.mrf.mxu0
    %v309 = vadd.f32 0.0, %v308
    %v310 = vpop.f32.mrf.mxu0
    %v311 = vadd.f32 0.0, %v310
    %312 = vdwg.mxu0
    %313 = vmatpush.bf16.msra.mxu0 %v238
    %314 = vmatpush.bf16.msra.mxu0 %v234
    %315 = vmatpush.bf16.msra.mxu0 %v230
    %316 = vmatpush.bf16.msra.mxu0 %v226
    %317 = vmatpush.bf16.msra.mxu0 %v222
    %318 = vmatpush.bf16.msra.mxu0 %v218
    %319 = vmatpush.bf16.msra.mxu0 %v214
    %320 = vmatpush.bf16.msra.mxu0 %v210
    %321 = vmatmul.bf16.gmra.mxu0 %v78
    %v322 = vpop.f32.mrf.mxu0
    %v323 = vadd.f32 0.0, %v322
    %v324 = vpop.f32.mrf.mxu0
    %v325 = vadd.f32 0.0, %v324
    %326 = vdwg.mxu0
    %v327 = vld [vmem:[%s1] sm:$0xf]
    %v328 = vld [vmem:[%s1 + $0x4] sm:$0xf]
    %v329 = vld [vmem:[%s1 + $0x8] sm:$0xf]
    %v330 = vld [vmem:[%s1 + $0xc] sm:$0xf]
    %v331 = vld [vmem:[%s1 + $0x10] sm:$0xf]
    %v332 = vld [vmem:[%s1 + $0x14] sm:$0xf]
    %v333 = vld [vmem:[%s1 + $0x18] sm:$0xf]
    %v334 = vld [vmem:[%s1 + $0x1c] sm:$0xf]
    %v335 = vld [vmem:[%s1 + $0x20] sm:$0xf]
    %v336 = vld [vmem:[%s1 + $0x24] sm:$0xf]
    %v337 = vld [vmem:[%s1 + $0x28] sm:$0xf]
    %v338 = vld [vmem:[%s1 + $0x2c] sm:$0xf]
    %v339 = vld [vmem:[%s1 + $0x30] sm:$0xf]
    %v340 = vld [vmem:[%s1 + $0x34] sm:$0xf]
    %v341 = vld [vmem:[%s1 + $0x38] sm:$0xf]
    %v342 = vld [vmem:[%s1 + $0x3c] sm:$0xf]
    %v343 = vld [vmem:[%s2] sm:$0x1]
    %v345 = vperm.slane %v343, 0
    %v363 = vunpack.c.l.b16 %v327
    %v364 = vunpack.c.l.b16 %v328
    %v365 = vunpack.c.l.b16 %v329
    %v366 = vunpack.c.l.b16 %v330
    %v367 = vunpack.c.l.b16 %v331
    %v368 = vunpack.c.l.b16 %v332
    %v369 = vunpack.c.l.b16 %v333
    %v370 = vunpack.c.l.b16 %v334
    %v371 = vunpack.c.l.b16 %v335
    %v372 = vunpack.c.l.b16 %v336
    %v373 = vunpack.c.l.b16 %v337
    %v374 = vunpack.c.l.b16 %v338
    %v375 = vunpack.c.l.b16 %v339
    %v376 = vunpack.c.l.b16 %v340
    %v377 = vunpack.c.l.b16 %v341
    %v378 = vunpack.c.l.b16 %v342
    %v379 = vpack.c.b16 %v364, %v363
    %v380 = vpack.c.b16 %v366, %v365
    %v381 = vpack.c.b16 %v368, %v367
    %v382 = vpack.c.b16 %v370, %v369
    %v383 = vpack.c.b16 %v372, %v371
    %v384 = vpack.c.b16 %v374, %v373
    %v385 = vpack.c.b16 %v376, %v375
    %v386 = vpack.c.b16 %v378, %v377
    %395 = vmatpush.bf16.msra.mxu0 %v386
    %396 = vmatpush.bf16.msra.mxu0 %v385
    %397 = vmatpush.bf16.msra.mxu0 %v384
    %398 = vmatpush.bf16.msra.mxu0 %v383
    %399 = vmatpush.bf16.msra.mxu0 %v382
    %400 = vmatpush.bf16.msra.mxu0 %v381
    %401 = vmatpush.bf16.msra.mxu0 %v380
    %402 = vmatpush.bf16.msra.mxu0 %v379
    %403 = vmatmul.bf16.gmra.mxu0 %v78
    %v404 = vpop.f32.mrf.mxu0
    %v405 = vadd.f32 %v345, %v404
    %v406 = vpop.f32.mrf.mxu0
    %v407 = vadd.f32 %v345, %v406
    %408 = vdwg.mxu0
    %v409 = vmax.f32 %v405, 0.0
    %v410 = vmax.f32 %v407, 0.0
    %v411 = vpack.c.bf16 %v410, %v409
    %v412 = vld [vmem:[#allocation2] sm:$0xf]
    %v413 = vld [vmem:[#allocation2 + $0x4] sm:$0xf]
    %v414 = vld [vmem:[#allocation2 + $0x8] sm:$0xf]
    %v415 = vld [vmem:[#allocation2 + $0xc] sm:$0xf]
    %v416 = vld [vmem:[#allocation2 + $0x10] sm:$0xf]
    %v417 = vld [vmem:[#allocation2 + $0x14] sm:$0xf]
    %v418 = vld [vmem:[#allocation2 + $0x18] sm:$0xf]
    %v419 = vld [vmem:[#allocation2 + $0x1c] sm:$0xf]
    %v420 = vld [vmem:[#allocation2 + $0x20] sm:$0xf]
    %v421 = vld [vmem:[#allocation2 + $0x24] sm:$0xf]
    %v422 = vld [vmem:[#allocation2 + $0x28] sm:$0xf]
    %v423 = vld [vmem:[#allocation2 + $0x2c] sm:$0xf]
    %v424 = vld [vmem:[#allocation2 + $0x30] sm:$0xf]
    %v425 = vld [vmem:[#allocation2 + $0x34] sm:$0xf]
    %v426 = vld [vmem:[#allocation2 + $0x38] sm:$0xf]
    %v427 = vld [vmem:[#allocation2 + $0x3c] sm:$0xf]
    %v444 = vunpack.c.l.b16 %v412
    %v445 = vunpack.c.l.b16 %v413
    %v446 = vunpack.c.l.b16 %v414
    %v447 = vunpack.c.l.b16 %v415
    %v448 = vunpack.c.l.b16 %v416
    %v449 = vunpack.c.l.b16 %v417
    %v450 = vunpack.c.l.b16 %v418
    %v451 = vunpack.c.l.b16 %v419
    %v452 = vunpack.c.l.b16 %v420
    %v453 = vunpack.c.l.b16 %v421
    %v454 = vunpack.c.l.b16 %v422
    %v455 = vunpack.c.l.b16 %v423
    %v456 = vunpack.c.l.b16 %v424
    %v457 = vunpack.c.l.b16 %v425
    %v458 = vunpack.c.l.b16 %v426
    %v459 = vunpack.c.l.b16 %v427
    %v460 = vpack.c.b16 %v445, %v444
    %v461 = vpack.c.b16 %v447, %v446
    %v462 = vpack.c.b16 %v449, %v448
    %v463 = vpack.c.b16 %v451, %v450
    %v464 = vpack.c.b16 %v453, %v452
    %v465 = vpack.c.b16 %v455, %v454
    %v466 = vpack.c.b16 %v457, %v456
    %v467 = vpack.c.b16 %v459, %v458
    %476 = vmatpush.bf16.msra.mxu0 %v467
    %477 = vmatpush.bf16.msra.mxu0 %v466
    %478 = vmatpush.bf16.msra.mxu0 %v465
    %479 = vmatpush.bf16.msra.mxu0 %v464
    %480 = vmatpush.bf16.msra.mxu0 %v463
    %481 = vmatpush.bf16.msra.mxu0 %v462
    %482 = vmatpush.bf16.msra.mxu0 %v461
    %483 = vmatpush.bf16.msra.mxu0 %v460
    %484 = vmatmul.bf16.gmra.mxu0 %v411
    %v485 = vpop.f32.mrf.mxu0
    %v486 = vadd.f32 %v281, %v485
    %v487 = vpop.f32.mrf.mxu0
    %v488 = vadd.f32 %v283, %v487
    %489 = vdwg.mxu0
    %v490 = vld [vmem:[%s5] sm:$0x1]
    %v492 = vperm.slane %v490, 0
    %v494 = vadd.f32 %v486, %v492
    %v495 = vadd.f32 %v488, %v492
    %v496 = vmax.f32 %v494, 0.0
    %v497 = vmax.f32 %v495, 0.0
    %v498 = vpack.c.bf16 %v497, %v496
    %s499 = scalar_lea.vmem [#allocation2], 64
    %v500 = vld [vmem:[%s499] sm:$0xf]
    %v501 = vld [vmem:[%s499 + $0x4] sm:$0xf]
    %v502 = vld [vmem:[%s499 + $0x8] sm:$0xf]
    %v503 = vld [vmem:[%s499 + $0xc] sm:$0xf]
    %v504 = vld [vmem:[%s499 + $0x10] sm:$0xf]
    %v505 = vld [vmem:[%s499 + $0x14] sm:$0xf]
    %v506 = vld [vmem:[%s499 + $0x18] sm:$0xf]
    %v507 = vld [vmem:[%s499 + $0x1c] sm:$0xf]
    %v508 = vld [vmem:[%s499 + $0x20] sm:$0xf]
    %v509 = vld [vmem:[%s499 + $0x24] sm:$0xf]
    %v510 = vld [vmem:[%s499 + $0x28] sm:$0xf]
    %v511 = vld [vmem:[%s499 + $0x2c] sm:$0xf]
    %v512 = vld [vmem:[%s499 + $0x30] sm:$0xf]
    %v513 = vld [vmem:[%s499 + $0x34] sm:$0xf]
    %v514 = vld [vmem:[%s499 + $0x38] sm:$0xf]
    %v515 = vld [vmem:[%s499 + $0x3c] sm:$0xf]
    %v532 = vunpack.c.l.b16 %v500
    %v533 = vunpack.c.l.b16 %v501
    %v534 = vunpack.c.l.b16 %v502
    %v535 = vunpack.c.l.b16 %v503
    %v536 = vunpack.c.l.b16 %v504
    %v537 = vunpack.c.l.b16 %v505
    %v538 = vunpack.c.l.b16 %v506
    %v539 = vunpack.c.l.b16 %v507
    %v540 = vunpack.c.l.b16 %v508
    %v541 = vunpack.c.l.b16 %v509
    %v542 = vunpack.c.l.b16 %v510
    %v543 = vunpack.c.l.b16 %v511
    %v544 = vunpack.c.l.b16 %v512
    %v545 = vunpack.c.l.b16 %v513
    %v546 = vunpack.c.l.b16 %v514
    %v547 = vunpack.c.l.b16 %v515
    %v548 = vpack.c.b16 %v533, %v532
    %v549 = vpack.c.b16 %v535, %v534
    %v550 = vpack.c.b16 %v537, %v536
    %v551 = vpack.c.b16 %v539, %v538
    %v552 = vpack.c.b16 %v541, %v540
    %v553 = vpack.c.b16 %v543, %v542
    %v554 = vpack.c.b16 %v545, %v544
    %v555 = vpack.c.b16 %v547, %v546
    %564 = vmatpush.bf16.msra.mxu0 %v555
    %565 = vmatpush.bf16.msra.mxu0 %v554
    %566 = vmatpush.bf16.msra.mxu0 %v553
    %567 = vmatpush.bf16.msra.mxu0 %v552
    %568 = vmatpush.bf16.msra.mxu0 %v551
    %569 = vmatpush.bf16.msra.mxu0 %v550
    %570 = vmatpush.bf16.msra.mxu0 %v549
    %571 = vmatpush.bf16.msra.mxu0 %v548
    %572 = vmatmul.bf16.gmra.mxu0 %v498
    %v573 = vpop.f32.mrf.mxu0
    %v574 = vadd.f32 %v295, %v573
    %v575 = vpop.f32.mrf.mxu0
    %v576 = vadd.f32 %v297, %v575
    %577 = vdwg.mxu0
    %s578 = scalar_lea.vmem %s5, 1
    %v579 = vld [vmem:[%s578] sm:$0x1]
    %v581 = vperm.slane %v579, 0
    %v583 = vadd.f32 %v574, %v581
    %v584 = vadd.f32 %v576, %v581
    %v585 = vmax.f32 %v583, 0.0
    %v586 = vmax.f32 %v584, 0.0
    %v587 = vpack.c.bf16 %v586, %v585
    %s588 = scalar_lea.vmem [#allocation2], 128
    %v589 = vld [vmem:[%s588] sm:$0xf]
    %v590 = vld [vmem:[%s588 + $0x4] sm:$0xf]
    %v591 = vld [vmem:[%s588 + $0x8] sm:$0xf]
    %v592 = vld [vmem:[%s588 + $0xc] sm:$0xf]
    %v593 = vld [vmem:[%s588 + $0x10] sm:$0xf]
    %v594 = vld [vmem:[%s588 + $0x14] sm:$0xf]
    %v595 = vld [vmem:[%s588 + $0x18] sm:$0xf]
    %v596 = vld [vmem:[%s588 + $0x1c] sm:$0xf]
    %v597 = vld [vmem:[%s588 + $0x20] sm:$0xf]
    %v598 = vld [vmem:[%s588 + $0x24] sm:$0xf]
    %v599 = vld [vmem:[%s588 + $0x28] sm:$0xf]
    %v600 = vld [vmem:[%s588 + $0x2c] sm:$0xf]
    %v601 = vld [vmem:[%s588 + $0x30] sm:$0xf]
    %v602 = vld [vmem:[%s588 + $0x34] sm:$0xf]
    %v603 = vld [vmem:[%s588 + $0x38] sm:$0xf]
    %v604 = vld [vmem:[%s588 + $0x3c] sm:$0xf]
    %v621 = vunpack.c.l.b16 %v589
    %v622 = vunpack.c.l.b16 %v590
    %v623 = vunpack.c.l.b16 %v591
    %v624 = vunpack.c.l.b16 %v592
    %v625 = vunpack.c.l.b16 %v593
    %v626 = vunpack.c.l.b16 %v594
    %v627 = vunpack.c.l.b16 %v595
    %v628 = vunpack.c.l.b16 %v596
    %v629 = vunpack.c.l.b16 %v597
    %v630 = vunpack.c.l.b16 %v598
    %v631 = vunpack.c.l.b16 %v599
    %v632 = vunpack.c.l.b16 %v600
    %v633 = vunpack.c.l.b16 %v601
    %v634 = vunpack.c.l.b16 %v602
    %v635 = vunpack.c.l.b16 %v603
    %v636 = vunpack.c.l.b16 %v604
    %v637 = vpack.c.b16 %v622, %v621
    %v638 = vpack.c.b16 %v624, %v623
    %v639 = vpack.c.b16 %v626, %v625
    %v640 = vpack.c.b16 %v628, %v627
    %v641 = vpack.c.b16 %v630, %v629
    %v642 = vpack.c.b16 %v632, %v631
    %v643 = vpack.c.b16 %v634, %v633
    %v644 = vpack.c.b16 %v636, %v635
    %653 = vmatpush.bf16.msra.mxu0 %v644
    %654 = vmatpush.bf16.msra.mxu0 %v643
    %655 = vmatpush.bf16.msra.mxu0 %v642
    %656 = vmatpush.bf16.msra.mxu0 %v641
    %657 = vmatpush.bf16.msra.mxu0 %v640
    %658 = vmatpush.bf16.msra.mxu0 %v639
    %659 = vmatpush.bf16.msra.mxu0 %v638
    %660 = vmatpush.bf16.msra.mxu0 %v637
    %661 = vmatmul.bf16.gmra.mxu0 %v587
    %v662 = vpop.f32.mrf.mxu0
    %v663 = vadd.f32 %v309, %v662
    %v664 = vpop.f32.mrf.mxu0
    %v665 = vadd.f32 %v311, %v664
    %666 = vdwg.mxu0
    %s667 = scalar_lea.vmem %s5, 2
    %v668 = vld [vmem:[%s667] sm:$0x1]
    %v670 = vperm.slane %v668, 0
    %v672 = vadd.f32 %v663, %v670
    %v673 = vadd.f32 %v665, %v670
    %v674 = vmax.f32 %v672, 0.0
    %v675 = vmax.f32 %v673, 0.0
    %v676 = vpack.c.bf16 %v675, %v674
    %s677 = scalar_lea.vmem [#allocation2], 192
    %v678 = vld [vmem:[%s677] sm:$0xf]
    %v679 = vld [vmem:[%s677 + $0x4] sm:$0xf]
    %v680 = vld [vmem:[%s677 + $0x8] sm:$0xf]
    %v681 = vld [vmem:[%s677 + $0xc] sm:$0xf]
    %v682 = vld [vmem:[%s677 + $0x10] sm:$0xf]
    %v683 = vld [vmem:[%s677 + $0x14] sm:$0xf]
    %v684 = vld [vmem:[%s677 + $0x18] sm:$0xf]
    %v685 = vld [vmem:[%s677 + $0x1c] sm:$0xf]
    %v686 = vld [vmem:[%s677 + $0x20] sm:$0xf]
    %v687 = vld [vmem:[%s677 + $0x24] sm:$0xf]
    %v688 = vld [vmem:[%s677 + $0x28] sm:$0xf]
    %v689 = vld [vmem:[%s677 + $0x2c] sm:$0xf]
    %v690 = vld [vmem:[%s677 + $0x30] sm:$0xf]
    %v691 = vld [vmem:[%s677 + $0x34] sm:$0xf]
    %v692 = vld [vmem:[%s677 + $0x38] sm:$0xf]
    %v693 = vld [vmem:[%s677 + $0x3c] sm:$0xf]
    %v710 = vunpack.c.l.b16 %v678
    %v711 = vunpack.c.l.b16 %v679
    %v712 = vunpack.c.l.b16 %v680
    %v713 = vunpack.c.l.b16 %v681
    %v714 = vunpack.c.l.b16 %v682
    %v715 = vunpack.c.l.b16 %v683
    %v716 = vunpack.c.l.b16 %v684
    %v717 = vunpack.c.l.b16 %v685
    %v718 = vunpack.c.l.b16 %v686
    %v719 = vunpack.c.l.b16 %v687
    %v720 = vunpack.c.l.b16 %v688
    %v721 = vunpack.c.l.b16 %v689
    %v722 = vunpack.c.l.b16 %v690
    %v723 = vunpack.c.l.b16 %v691
    %v724 = vunpack.c.l.b16 %v692
    %v725 = vunpack.c.l.b16 %v693
    %v726 = vpack.c.b16 %v711, %v710
    %v727 = vpack.c.b16 %v713, %v712
    %v728 = vpack.c.b16 %v715, %v714
    %v729 = vpack.c.b16 %v717, %v716
    %v730 = vpack.c.b16 %v719, %v718
    %v731 = vpack.c.b16 %v721, %v720
    %v732 = vpack.c.b16 %v723, %v722
    %v733 = vpack.c.b16 %v725, %v724
    %742 = vmatpush.bf16.msra.mxu0 %v733
    %743 = vmatpush.bf16.msra.mxu0 %v732
    %744 = vmatpush.bf16.msra.mxu0 %v731
    %745 = vmatpush.bf16.msra.mxu0 %v730
    %746 = vmatpush.bf16.msra.mxu0 %v729
    %747 = vmatpush.bf16.msra.mxu0 %v728
    %748 = vmatpush.bf16.msra.mxu0 %v727
    %749 = vmatpush.bf16.msra.mxu0 %v726
    %750 = vmatmul.bf16.gmra.mxu0 %v676
    %v751 = vpop.f32.mrf.mxu0
    %v752 = vadd.f32 %v323, %v751
    %v753 = vpop.f32.mrf.mxu0
    %v754 = vadd.f32 %v325, %v753
    %755 = vdwg.mxu0
    %s756 = scalar_lea.vmem %s5, 3
    %v757 = vld [vmem:[%s756] sm:$0x1]
    %v759 = vperm.slane %v757, 0
    %v761 = vadd.f32 %v752, %v759
    %v762 = vadd.f32 %v754, %v759
    %v763 = vmax.f32 %v761, 0.0
    %v764 = vmax.f32 %v762, 0.0
    %v765 = vpack.c.bf16 %v764, %v763
    %v766 = vld [vmem:[#allocation6] sm:$0xf]
    %v767 = vld [vmem:[#allocation6 + $0x4] sm:$0xf]
    %v768 = vld [vmem:[#allocation6 + $0x8] sm:$0xf]
    %v769 = vld [vmem:[#allocation6 + $0xc] sm:$0xf]
    %v770 = vld [vmem:[#allocation6 + $0x10] sm:$0xf]
    %v771 = vld [vmem:[#allocation6 + $0x14] sm:$0xf]
    %v772 = vld [vmem:[#allocation6 + $0x18] sm:$0xf]
    %v773 = vld [vmem:[#allocation6 + $0x1c] sm:$0xf]
    %v774 = vld [vmem:[#allocation6 + $0x20] sm:$0xf]
    %v775 = vld [vmem:[#allocation6 + $0x24] sm:$0xf]
    %v776 = vld [vmem:[#allocation6 + $0x28] sm:$0xf]
    %v777 = vld [vmem:[#allocation6 + $0x2c] sm:$0xf]
    %v778 = vld [vmem:[#allocation6 + $0x30] sm:$0xf]
    %v779 = vld [vmem:[#allocation6 + $0x34] sm:$0xf]
    %v780 = vld [vmem:[#allocation6 + $0x38] sm:$0xf]
    %v781 = vld [vmem:[#allocation6 + $0x3c] sm:$0xf]
    %v782 = vld [vmem:[%s7] sm:$0x1]
    %v784 = vperm.slane %v782, 0
    %v802 = vunpack.c.l.b16 %v766
    %v803 = vunpack.c.l.b16 %v767
    %v804 = vunpack.c.l.b16 %v768
    %v805 = vunpack.c.l.b16 %v769
    %v806 = vunpack.c.l.b16 %v770
    %v807 = vunpack.c.l.b16 %v771
    %v808 = vunpack.c.l.b16 %v772
    %v809 = vunpack.c.l.b16 %v773
    %v810 = vunpack.c.l.b16 %v774
    %v811 = vunpack.c.l.b16 %v775
    %v812 = vunpack.c.l.b16 %v776
    %v813 = vunpack.c.l.b16 %v777
    %v814 = vunpack.c.l.b16 %v778
    %v815 = vunpack.c.l.b16 %v779
    %v816 = vunpack.c.l.b16 %v780
    %v817 = vunpack.c.l.b16 %v781
    %v818 = vpack.c.b16 %v803, %v802
    %v819 = vpack.c.b16 %v805, %v804
    %v820 = vpack.c.b16 %v807, %v806
    %v821 = vpack.c.b16 %v809, %v808
    %v822 = vpack.c.b16 %v811, %v810
    %v823 = vpack.c.b16 %v813, %v812
    %v824 = vpack.c.b16 %v815, %v814
    %v825 = vpack.c.b16 %v817, %v816
    %834 = vmatpush.bf16.msra.mxu0 %v825
    %835 = vmatpush.bf16.msra.mxu0 %v824
    %836 = vmatpush.bf16.msra.mxu0 %v823
    %837 = vmatpush.bf16.msra.mxu0 %v822
    %838 = vmatpush.bf16.msra.mxu0 %v821
    %839 = vmatpush.bf16.msra.mxu0 %v820
    %840 = vmatpush.bf16.msra.mxu0 %v819
    %841 = vmatpush.bf16.msra.mxu0 %v818
    %842 = vmatmul.bf16.gmra.mxu0 %v765
    %v843 = vpop.f32.mrf.mxu0
    %v844 = vadd.f32 %v784, %v843
    %v845 = vpop.f32.mrf.mxu0
    %v846 = vadd.f32 %v784, %v845
    %847 = vdwg.mxu0
    %848 = vst [vmem:[%s8] sm:$0xff] %v844
    %849 = vst [vmem:[%s8 + $0x8] sm:$0xff] %v846
    // Predicated region
    $region46: #{d2rl_forward.1} parent=1 // pred_check
      _
    $region47: #{d2rl_forward.1} parent=1 // pred_check_branch
      %851 = sbr.rel (0) target = $region49
    $region48: #{d2rl_forward.1} parent=1 // pred_region
      _
    $region49: #{d2rl_forward.1} parent=1 // pred_fallthru
      _
    // Predicated region
    $region50: #{d2rl_forward.1} parent=1 // pred_check
      _
    $region51: #{d2rl_forward.1} parent=1 // pred_check_branch
      %853 = sbr.rel (0) target = $region53
    $region52: #{d2rl_forward.1} parent=1 // pred_region
      _
    $region53: #{d2rl_forward.1} parent=1 // pred_fallthru
      _
    %854 = vsyncpa [#allocation3], 1
    %855 = vsyncpa [#allocation5], 1

</llo_original>
